<compile_context>
chip_gen: v7x
topology: tpu7x:2x2x1
jax: 0.10.0
libtpu: 0.0.40
codegen_flags: <defaults>
</compile_context>

<pallas_src>
import math
import jax
import jax.numpy as jnp
from jax.experimental import pallas as pl
from jax.experimental.pallas import tpu as pltpu

BN_EPS = 1e-5


def _round_up(n, m):
    return ((n + m - 1) // m) * m


# --------------------------------------------------------------------------- #
# Kernel: 4 matmuls per batch sub-block, f32 accumulation, narrow f32 output.
# --------------------------------------------------------------------------- #
def _make_fee_predictor_kernel(n_sub):
    """n_sub: number of independent row sub-blocks per grid step (static)."""

    def kernel(x_ref, w1_ref, b1_ref, w2_ref, b2_ref,
               wh1_ref, bh1_ref, wh2_ref, bh2_ref, out_ref):
        # x_ref   : (TILE_B, D)            input tile (f32 or bf16)
        # w1_ref  : (D, 256)        b1_ref : (1, 256)      f32 bias
        # w2_ref  : (256, 128)      b2_ref : (1, 128)      (BN1 folded in)
        # wh1_ref : (128, HID_PAD)  bh1_ref: (1, HID_PAD)  (BN2 folded, heads concat)
        # wh2_ref : (HID_PAD, OUT_W) bh2_ref: (1, OUT_W)   (block-diagonal heads)
        # out_ref : (TILE_B, OUT_W) f32
        wt = w1_ref.dtype  # matmul operand dtype (bf16 default, f32 supported)

        w1 = w1_ref[...]
        b1 = b1_ref[...]
        w2 = w2_ref[...]
        b2 = b2_ref[...]
        wh1 = wh1_ref[...]
        bh1 = bh1_ref[...]
        wh2 = wh2_ref[...]
        bh2 = bh2_ref[...]

        tile_b = x_ref.shape[0]
        sub = tile_b // n_sub

        # Independent sub-blocks -> scheduler can co-issue MXU (matmul of block j)
        # with VPU epilogue (bias/ReLU/cast of block j-1).
        for j in range(n_sub):
            rows = pl.ds(j * sub, sub)

            xb = x_ref[rows, :].astype(wt)          # in-kernel cast (no wrapper pass)
            h = jnp.dot(xb, w1, preferred_element_type=jnp.float32)
            h = jnp.maximum(h + b1, 0.0)

            h = jnp.dot(h.astype(wt), w2, preferred_element_type=jnp.float32)
            h = jnp.maximum(h + b2, 0.0)

            z = jnp.dot(h.astype(wt), wh1, preferred_element_type=jnp.float32)
            z = jnp.maximum(z + bh1, 0.0)

            o = jnp.dot(z.astype(wt), wh2, preferred_element_type=jnp.float32)
            out_ref[rows, :] = (o + bh2).astype(out_ref.dtype)

    return kernel


# --------------------------------------------------------------------------- #
# Parameter init (mirrors PyTorch defaults) — "raw" params, like the nn.Module.
# --------------------------------------------------------------------------- #
def _linear_init(key, fan_in, fan_out):
    kw, kb = jax.random.split(key)
    bound = 1.0 / math.sqrt(fan_in)
    w = jax.random.uniform(kw, (fan_in, fan_out), jnp.float32, -bound, bound)
    b = jax.random.uniform(kb, (1, fan_out), jnp.float32, -bound, bound)
    return w, b


def init_fee_earnings_predictor_params(key, input_size, time_horizons=(1, 7, 30)):
    H = len(time_horizons)
    keys = jax.random.split(key, 6 + 2 * H)

    w1, b1 = _linear_init(keys[0], input_size, 256)
    w2, b2 = _linear_init(keys[1], 256, 128)

    g1 = jnp.ones((1, 256), jnp.float32)
    be1 = jnp.zeros((1, 256), jnp.float32)
    rm1 = 0.1 * jax.random.normal(keys[2], (1, 256), jnp.float32)
    rv1 = 1.0 + 0.1 * jax.random.uniform(keys[3], (1, 256), jnp.float32)

    g2 = jnp.ones((1, 128), jnp.float32)
    be2 = jnp.zeros((1, 128), jnp.float32)
    rm2 = 0.1 * jax.random.normal(keys[4], (1, 128), jnp.float32)
    rv2 = 1.0 + 0.1 * jax.random.uniform(keys[5], (1, 128), jnp.float32)

    wh1_list, bh1_list, wh2_list, bh2_list = [], [], [], []
    for i in range(H):
        wa, ba = _linear_init(keys[6 + 2 * i], 128, 64)
        wb, bb = _linear_init(keys[7 + 2 * i], 64, 1)
        wh1_list.append(wa); bh1_list.append(ba)
        wh2_list.append(wb); bh2_list.append(bb)

    return dict(
        w1=w1, b1=b1, g1=g1, be1=be1, rm1=rm1, rv1=rv1,
        w2=w2, b2=b2, g2=g2, be2=be2, rm2=rm2, rv2=rv2,
        wh1=jnp.stack(wh1_list),   # (H, 128, 64)
        bh1=jnp.stack(bh1_list),   # (H, 1, 64)
        wh2=jnp.stack(wh2_list),   # (H, 64, 1)
        bh2=jnp.stack(bh2_list),   # (H, 1, 1)
    )


# --------------------------------------------------------------------------- #
# Pack: fold eval-mode BN forward, fuse heads, pad to efficient widths.
# --------------------------------------------------------------------------- #
def pack_fee_predictor_params(raw, time_horizons=(1, 7, 30), param_dtype=jnp.bfloat16):
    H = len(time_horizons)

    # BN1: y = h*scale1 + shift1  -> folded into Linear2
    scale1 = raw["g1"] * jax.lax.rsqrt(raw["rv1"] + BN_EPS)          # (1, 256)
    shift1 = raw["be1"] - raw["rm1"] * scale1
    w2f = raw["w2"] * scale1.reshape(-1, 1)                          # (256, 128)
    b2f = raw["b2"] + shift1 @ raw["w2"]                             # (1, 128)

    # BN2 folded into concatenated head layer-1
    scale2 = raw["g2"] * jax.lax.rsqrt(raw["rv2"] + BN_EPS)          # (1, 128)
    shift2 = raw["be2"] - raw["rm2"] * scale2

    wh1_cat = jnp.concatenate([raw["wh1"][i] for i in range(H)], axis=1)  # (128, H*64)
    bh1_cat = jnp.concatenate([raw["bh1"][i] for i in range(H)], axis=1)  # (1, H*64)
    wh1f = wh1_cat * scale2.reshape(-1, 1)
    bh1f = bh1_cat + shift2 @ wh1_cat

    hid = H * 64
    hid_pad = _round_up(hid, 128)                                    # lane-dense hidden
    wh1f = jnp.pad(wh1f, ((0, 0), (0, hid_pad - hid)))               # (128, hid_pad)
    bh1f = jnp.pad(bh1f, ((0, 0), (0, hid_pad - hid)))               # (1, hid_pad)

    # Head layer-2 as a block-diagonal matrix producing a *narrow* output block:
    # only OUT_W = round_up(H, 8) columns, so HBM writeback is ~16x smaller than
    # a 128-wide padded slab.  Real horizons are the first H columns.
    out_w = _round_up(H, 8)
    wh2_blk = jnp.zeros((hid_pad, out_w), jnp.float32)
    bh2_pad = jnp.zeros((1, out_w), jnp.float32)
    for i in range(H):
        wh2_blk = wh2_blk.at[i * 64:(i + 1) * 64, i].set(raw["wh2"][i][:, 0])
        bh2_pad = bh2_pad.at[0, i].set(raw["bh2"][i][0, 0])

    # TODO(synk): if input_size is large and not a multiple of 128, pad w1 rows
    # (and x columns) to the next multiple of 128 for fully lane-dense first-matmul
    # operands; unnecessary for small D since the full-extent block is already legal.
    return dict(
        w1=raw["w1"].astype(param_dtype), b1=raw["b1"].astype(jnp.float32),
        w2=w2f.astype(param_dtype),       b2=b2f.astype(jnp.float32),
        wh1=wh1f.astype(param_dtype),     bh1=bh1f.astype(jnp.float32),
        wh2=wh2_blk.astype(param_dtype),  bh2=bh2_pad.astype(jnp.float32),
    )


# --------------------------------------------------------------------------- #
# Forward wrapper: batch-tiled pallas_call (no wrapper-side cast/pad of x).
# --------------------------------------------------------------------------- #
def fee_earnings_predictor_forward(x, packed, time_horizons=(1, 7, 30), tile_b=2048):
    """Returns {f"fees_{h}d": (B,1) float32}, matching the PyTorch module."""
    B, D = x.shape
    H = len(time_horizons)
    out_w = packed["wh2"].shape[1]
    hid_pad = packed["wh1"].shape[1]

    # Tile sizing:
    #  - multiple of 8 (sublane alignment),
    #  - capped so the grid has >=2 steps whenever B allows it (v7x: shards the
    #    batch axis across both TensorCores via "parallel" semantics),
    #  - never larger than the (rounded-up) batch.
    two_step_cap = max(8, _round_up(-(-B // 2), 8))
    tile_b = max(8, min(_round_up(tile_b, 8), two_step_cap, _round_up(B, 8)))

    # In-kernel sub-tiling factor: 2-4 independent row sub-blocks for MXU/VPU overlap.
    n_sub = 1
    for cand in (4, 2):
        if tile_b % cand == 0 and tile_b // cand >= 128:
            n_sub = cand
            break

    # VMEM budget estimate (double-buffered x/out tiles + resident weights +
    # f32 intermediates + operand-dtype casts), used to set an explicit limit
    # that is safe on v5e's 16 MiB scoped default and v7x's 64 MiB physical VMEM.
    wbytes = packed["w1"].dtype.itemsize
    est = (
        2 * tile_b * D * x.dtype.itemsize                      # x tile, double-buffered
        + 2 * tile_b * out_w * 4                               # out tile, double-buffered
        + 2 * wbytes * (D * 256 + 256 * 128 + 128 * hid_pad + hid_pad * out_w)
        + 2 * 4 * (256 + 128 + hid_pad + out_w)                # f32 biases
        + tile_b * (256 + 128 + hid_pad) * (4 + wbytes)        # intermediates + casts
    )
    vmem_limit = int(min(64 * 1024 * 1024, max(32 * 1024 * 1024, 2 * est)))

    def full_spec(arr):
        nd = arr.ndim
        return pl.BlockSpec(arr.shape, lambda i, _n=nd: (0,) * _n)

    kernel = _make_fee_predictor_kernel(n_sub)

    out = pl.pallas_call(
        kernel,
        out_shape=jax.ShapeDtypeStruct((B, out_w), jnp.float32),
        grid=(pl.cdiv(B, tile_b),),            # ragged trailing block handled by Pallas
        in_specs=[
            pl.BlockSpec((tile_b, D), lambda i: (i, 0)),       # x: batch-tiled
            full_spec(packed["w1"]), full_spec(packed["b1"]),
            full_spec(packed["w2"]), full_spec(packed["b2"]),
            full_spec(packed["wh1"]), full_spec(packed["bh1"]),
            full_spec(packed["wh2"]), full_spec(packed["bh2"]),
        ],
        out_specs=pl.BlockSpec((tile_b, out_w), lambda i: (i, 0)),
        compiler_params=pltpu.CompilerParams(
            dimension_semantics=("parallel",),  # shard batch tiles across TCs (v7x)
            vmem_limit_bytes=vmem_limit,
        ),
    )(x, packed["w1"], packed["b1"], packed["w2"], packed["b2"],
      packed["wh1"], packed["bh1"], packed["wh2"], packed["bh2"])

    return {f"fees_{h}d": out[:, i:i + 1] for i, h in enumerate(time_horizons)}


# --------------------------------------------------------------------------- #
# Pure-JAX reference on the RAW (unfolded) params — validates BN fold + fusion.
# --------------------------------------------------------------------------- #
def _reference_forward(x, raw, time_horizons=(1, 7, 30)):
    h = jnp.maximum(x @ raw["w1"] + raw["b1"], 0.0)
    h = (h - raw["rm1"]) / jnp.sqrt(raw["rv1"] + BN_EPS) * raw["g1"] + raw["be1"]
    h = jnp.maximum(h @ raw["w2"] + raw["b2"], 0.0)
    h = (h - raw["rm2"]) / jnp.sqrt(raw["rv2"] + BN_EPS) * raw["g2"] + raw["be2"]
    out = {}
    for i, hz in enumerate(time_horizons):
        z = jnp.maximum(h @ raw["wh1"][i] + raw["bh1"][i], 0.0)
        out[f"fees_{hz}d"] = z @ raw["wh2"][i] + raw["bh2"][i]
    return out


if __name__ == "__main__":
    B = 8
    INPUT_SIZE = 32
    TIME_HORIZONS = (1, 7, 30)

    key = jax.random.PRNGKey(0)
    kx, kp = jax.random.split(key)

    x = jax.random.normal(kx, (B, INPUT_SIZE), dtype=jnp.float32)
    raw = init_fee_earnings_predictor_params(kp, INPUT_SIZE, TIME_HORIZONS)
    ref = _reference_forward(x, raw, TIME_HORIZONS)

    # f32 weight path: exactness check of the BN fold / head fusion / kernel.
    packed_f32 = pack_fee_predictor_params(raw, TIME_HORIZONS, param_dtype=jnp.float32)
    preds = fee_earnings_predictor_forward(x, packed_f32, TIME_HORIZONS)
    preds = jax.block_until_ready(preds)
    for k in preds:
        assert preds[k].shape == (B, 1), (k, preds[k].shape)
        assert jnp.allclose(preds[k], ref[k], atol=1e-4, rtol=1e-4), k

    # bf16 weight path (default, fast MXU path): tolerance check vs f32 reference.
    packed_bf16 = pack_fee_predictor_params(raw, TIME_HORIZONS)   # bf16 default
    preds_bf16 = fee_earnings_predictor_forward(x, packed_bf16, TIME_HORIZONS)
    preds_bf16 = jax.block_until_ready(preds_bf16)
    for k in preds_bf16:
        assert preds_bf16[k].shape == (B, 1), (k, preds_bf16[k].shape)
        assert jnp.allclose(preds_bf16[k], ref[k], atol=5e-2, rtol=5e-2), k

    print("KERNEL_OK")
</pallas_src>

<mosaic_0001>
module attributes {stable_mosaic.version = 11 : i64} {
  func.func @kernel(%arg0: i32, %arg1: memref<8x32xf32, #tpu.memory_space<vmem>>, %arg2: memref<32x256xf32, #tpu.memory_space<vmem>>, %arg3: memref<1x256xf32, #tpu.memory_space<vmem>>, %arg4: memref<256x128xf32, #tpu.memory_space<vmem>>, %arg5: memref<1x128xf32, #tpu.memory_space<vmem>>, %arg6: memref<128x256xf32, #tpu.memory_space<vmem>>, %arg7: memref<1x256xf32, #tpu.memory_space<vmem>>, %arg8: memref<256x8xf32, #tpu.memory_space<vmem>>, %arg9: memref<1x8xf32, #tpu.memory_space<vmem>>, %arg10: memref<8x8xf32, #tpu.memory_space<vmem>>) attributes {dimension_semantics = [#tpu.dimension_semantics<parallel>], iteration_bounds = array<i64: 1>, scalar_prefetch = 0 : i64, scratch_operands = 0 : i64, tpu.core_type = #tpu.core_type<tc>, window_params = [{transform_indices = @transform_0, window_bounds = array<i64: 8, 32>}, {pipeline_mode = #tpu.pipeline_mode<synchronous>, transform_indices = @transform_1, window_bounds = array<i64: 32, 256>}, {pipeline_mode = #tpu.pipeline_mode<synchronous>, transform_indices = @transform_2, window_bounds = array<i64: 1, 256>}, {pipeline_mode = #tpu.pipeline_mode<synchronous>, transform_indices = @transform_3, window_bounds = array<i64: 256, 128>}, {pipeline_mode = #tpu.pipeline_mode<synchronous>, transform_indices = @transform_4, window_bounds = array<i64: 1, 128>}, {pipeline_mode = #tpu.pipeline_mode<synchronous>, transform_indices = @transform_5, window_bounds = array<i64: 128, 256>}, {pipeline_mode = #tpu.pipeline_mode<synchronous>, transform_indices = @transform_6, window_bounds = array<i64: 1, 256>}, {pipeline_mode = #tpu.pipeline_mode<synchronous>, transform_indices = @transform_7, window_bounds = array<i64: 256, 8>}, {pipeline_mode = #tpu.pipeline_mode<synchronous>, transform_indices = @transform_8, window_bounds = array<i64: 1, 8>}, {transform_indices = @transform_9, window_bounds = array<i64: 8, 8>}]} {
    %c0 = arith.constant 0 : index
    %c0_0 = arith.constant 0 : index
    %0 = vector.load %arg2[%c0, %c0_0] : memref<32x256xf32, #tpu.memory_space<vmem>>, vector<32x256xf32>
    %c0_1 = arith.constant 0 : index
    %c0_2 = arith.constant 0 : index
    %1 = vector.load %arg3[%c0_1, %c0_2] : memref<1x256xf32, #tpu.memory_space<vmem>>, vector<1x256xf32>
    %c0_3 = arith.constant 0 : index
    %c0_4 = arith.constant 0 : index
    %2 = vector.load %arg4[%c0_3, %c0_4] : memref<256x128xf32, #tpu.memory_space<vmem>>, vector<256x128xf32>
    %c0_5 = arith.constant 0 : index
    %c0_6 = arith.constant 0 : index
    %3 = vector.load %arg5[%c0_5, %c0_6] : memref<1x128xf32, #tpu.memory_space<vmem>>, vector<1x128xf32>
    %c0_7 = arith.constant 0 : index
    %c0_8 = arith.constant 0 : index
    %4 = vector.load %arg6[%c0_7, %c0_8] : memref<128x256xf32, #tpu.memory_space<vmem>>, vector<128x256xf32>
    %c0_9 = arith.constant 0 : index
    %c0_10 = arith.constant 0 : index
    %5 = vector.load %arg7[%c0_9, %c0_10] : memref<1x256xf32, #tpu.memory_space<vmem>>, vector<1x256xf32>
    %c0_11 = arith.constant 0 : index
    %c0_12 = arith.constant 0 : index
    %6 = vector.load %arg8[%c0_11, %c0_12] : memref<256x8xf32, #tpu.memory_space<vmem>>, vector<256x8xf32>
    %c0_13 = arith.constant 0 : index
    %c0_14 = arith.constant 0 : index
    %7 = vector.load %arg9[%c0_13, %c0_14] : memref<1x8xf32, #tpu.memory_space<vmem>>, vector<1x8xf32>
    %c0_15 = arith.constant 0 : index
    %c0_16 = arith.constant 0 : index
    %8 = vector.load %arg1[%c0_15, %c0_16] : memref<8x32xf32, #tpu.memory_space<vmem>>, vector<8x32xf32>
    %cst = arith.constant dense<0.000000e+00> : vector<8x256xf32>
    %9 = tpu.matmul %8, %0, %cst {dimension_numbers = #tpu.dot_dimension_numbers<[1], [0], [0], [1], [0, 0, 1, 1], [], []>} : vector<8x32xf32>, vector<32x256xf32>, vector<8x256xf32> -> vector<8x256xf32>
    %10 = vector.broadcast %1 : vector<1x256xf32> to vector<8x256xf32>
    %11 = arith.addf %9, %10 : vector<8x256xf32>
    %cst_17 = arith.constant 0.000000e+00 : f32
    %12 = vector.broadcast %cst_17 : f32 to vector<8x256xf32>
    %13 = arith.maximumf %11, %12 : vector<8x256xf32>
    %cst_18 = arith.constant dense<0.000000e+00> : vector<8x128xf32>
    %14 = tpu.matmul %13, %2, %cst_18 {dimension_numbers = #tpu.dot_dimension_numbers<[1], [0], [0], [1], [0, 0, 1, 1], [], []>} : vector<8x256xf32>, vector<256x128xf32>, vector<8x128xf32> -> vector<8x128xf32>
    %15 = vector.broadcast %3 : vector<1x128xf32> to vector<8x128xf32>
    %16 = arith.addf %14, %15 : vector<8x128xf32>
    %cst_19 = arith.constant 0.000000e+00 : f32
    %17 = vector.broadcast %cst_19 : f32 to vector<8x128xf32>
    %18 = arith.maximumf %16, %17 : vector<8x128xf32>
    %cst_20 = arith.constant dense<0.000000e+00> : vector<8x256xf32>
    %19 = tpu.matmul %18, %4, %cst_20 {dimension_numbers = #tpu.dot_dimension_numbers<[1], [0], [0], [1], [0, 0, 1, 1], [], []>} : vector<8x128xf32>, vector<128x256xf32>, vector<8x256xf32> -> vector<8x256xf32>
    %20 = vector.broadcast %5 : vector<1x256xf32> to vector<8x256xf32>
    %21 = arith.addf %19, %20 : vector<8x256xf32>
    %cst_21 = arith.constant 0.000000e+00 : f32
    %22 = vector.broadcast %cst_21 : f32 to vector<8x256xf32>
    %23 = arith.maximumf %21, %22 : vector<8x256xf32>
    %cst_22 = arith.constant dense<0.000000e+00> : vector<8x8xf32>
    %24 = tpu.matmul %23, %6, %cst_22 {dimension_numbers = #tpu.dot_dimension_numbers<[1], [0], [0], [1], [0, 0, 1, 1], [], []>} : vector<8x256xf32>, vector<256x8xf32>, vector<8x8xf32> -> vector<8x8xf32>
    %25 = vector.broadcast %7 : vector<1x8xf32> to vector<8x8xf32>
    %26 = arith.addf %24, %25 : vector<8x8xf32>
    %c0_23 = arith.constant 0 : index
    %c0_24 = arith.constant 0 : index
    %27 = vector.load %arg10[%c0_23, %c0_24] : memref<8x8xf32, #tpu.memory_space<vmem>>, vector<8x8xf32>
    tpu.vector_store %arg10[%c0_23, %c0_24], %26 {strides = array<i32>} : memref<8x8xf32, #tpu.memory_space<vmem>>, vector<8x8xf32>,
    return
  }
  func.func @transform_0(%arg0: i32) -> (i32, i32) {
    %c0_i32 = arith.constant 0 : i32
    %c0_i32_0 = arith.constant 0 : i32
    return %arg0, %c0_i32 : i32, i32
  }
  func.func @transform_1(%arg0: i32) -> (i32, i32) {
    %c0_i32 = arith.constant 0 : i32
    %c0_i32_0 = arith.constant 0 : i32
    %c0_i32_1 = arith.constant 0 : i32
    return %c0_i32, %c0_i32_0 : i32, i32
  }
  func.func @transform_2(%arg0: i32) -> (i32, i32) {
    %c0_i32 = arith.constant 0 : i32
    %c0_i32_0 = arith.constant 0 : i32
    %c0_i32_1 = arith.constant 0 : i32
    return %c0_i32, %c0_i32_0 : i32, i32
  }
  func.func @transform_3(%arg0: i32) -> (i32, i32) {
    %c0_i32 = arith.constant 0 : i32
    %c0_i32_0 = arith.constant 0 : i32
    %c0_i32_1 = arith.constant 0 : i32
    return %c0_i32, %c0_i32_0 : i32, i32
  }
  func.func @transform_4(%arg0: i32) -> (i32, i32) {
    %c0_i32 = arith.constant 0 : i32
    %c0_i32_0 = arith.constant 0 : i32
    %c0_i32_1 = arith.constant 0 : i32
    return %c0_i32, %c0_i32_0 : i32, i32
  }
  func.func @transform_5(%arg0: i32) -> (i32, i32) {
    %c0_i32 = arith.constant 0 : i32
    %c0_i32_0 = arith.constant 0 : i32
    %c0_i32_1 = arith.constant 0 : i32
    return %c0_i32, %c0_i32_0 : i32, i32
  }
  func.func @transform_6(%arg0: i32) -> (i32, i32) {
    %c0_i32 = arith.constant 0 : i32
    %c0_i32_0 = arith.constant 0 : i32
    %c0_i32_1 = arith.constant 0 : i32
    return %c0_i32, %c0_i32_0 : i32, i32
  }
  func.func @transform_7(%arg0: i32) -> (i32, i32) {
    %c0_i32 = arith.constant 0 : i32
    %c0_i32_0 = arith.constant 0 : i32
    %c0_i32_1 = arith.constant 0 : i32
    return %c0_i32, %c0_i32_0 : i32, i32
  }
  func.func @transform_8(%arg0: i32) -> (i32, i32) {
    %c0_i32 = arith.constant 0 : i32
    %c0_i32_0 = arith.constant 0 : i32
    %c0_i32_1 = arith.constant 0 : i32
    return %c0_i32, %c0_i32_0 : i32, i32
  }
  func.func @transform_9(%arg0: i32) -> (i32, i32) {
    %c0_i32 = arith.constant 0 : i32
    %c0_i32_0 = arith.constant 0 : i32
    return %arg0, %c0_i32 : i32, i32
  }
}

</mosaic_0001>

<llo_original>
// kernel: tpu_custom_call.1
$region0: #{tpu_custom_call.1}
  #allocation0 [shape = 'u32[]', space=smem, size = 0x4, offset = 0x4, fixed_abs, tag = 'smem constant byte address 0x4 - core index']
  #allocation1 [shape = 'u32[144,128]{1,0:T(1,128)}', space=vmem, size = 0x12000, scoped, tag = 'internal scratch']
  %s0 = inlined_call_operand.vmem [shape: f32[8,32], index: 0, kind: input, shape index: {}]
  %s1 = inlined_call_operand.hbm [shape: f32[32,256], index: 1, kind: input, shape index: {}]
  %s2 = inlined_call_operand.vmem [shape: f32[1,256], index: 2, kind: input, shape index: {}]
  %s3 = inlined_call_operand.vmem [shape: f32[256,128], index: 3, kind: input, shape index: {}]
  %s4 = inlined_call_operand.vmem [shape: f32[1,128], index: 4, kind: input, shape index: {}]
  %s5 = inlined_call_operand.hbm [shape: f32[128,256], index: 5, kind: input, shape index: {}]
  %s6 = inlined_call_operand.vmem [shape: f32[1,256], index: 6, kind: input, shape index: {}]
  %s7 = inlined_call_operand.vmem [shape: f32[256,8], index: 7, kind: input, shape index: {}]
  %s8 = inlined_call_operand.vmem [shape: f32[1,8], index: 8, kind: input, shape index: {}]
  %s9 = inlined_call_operand.hbm [shape: f32[8,8], index: 9, kind: output, shape index: {}]
  %s10 = sld [smem:[#allocation0]]
  $region54: #{tpu_custom_call.1} parent=0
    _
  %s12 = ssub.s32 1, %s10
  %s13 = scalar_select 0, %s12, %s10
  $region1: #{tpu_custom_call.1} parent=0
    #allocation2 [shape = 'u8[32768]{0}', space=vmem, size = 0x8000, scoped, tag = 'input window, operand 1, single buffered']
    #allocation3 [shape = 's32[1]{0}', space=sflag, size = 0x4, scoped, tag = 'scoped memory for tpu_custom_call.1']
    #allocation4 [shape = 's32[1]{0}', space=sflag, size = 0x4, scoped, tag = 'scoped memory for tpu_custom_call.1']
    #allocation5 [shape = 'u8[131072]{0}', space=vmem, size = 0x20000, scoped, tag = 'input window, operand 5, single buffered']
    #allocation6 [shape = 's32[1]{0}', space=sflag, size = 0x4, scoped, tag = 'scoped memory for tpu_custom_call.1']
    #allocation7 [shape = 'u8[4096]{0}', space=vmem, size = 0x1000, scoped, tag = 'output window, operand 0, single buffered']
    %14 = vsyncpa [#allocation3], 0
    %15 = vsyncpa [#allocation6], 0
    %16 = vsyncpa [#allocation4], 0
    // Predicated region
    $region2: #{tpu_custom_call.1} parent=1 // pred_check
      _
    $region3: #{tpu_custom_call.1} parent=1 // pred_check_branch
      %18 = sbr.rel (0) target = $region5
    $region4: #{tpu_custom_call.1} parent=1 // pred_region
      _
    $region5: #{tpu_custom_call.1} parent=1 // pred_fallthru
      _
    // Predicated region
    $region6: #{tpu_custom_call.1} parent=1 // pred_check
      _
    $region7: #{tpu_custom_call.1} parent=1 // pred_check_branch
      %20 = sbr.rel (0) target = $region9
    $region8: #{tpu_custom_call.1} parent=1 // pred_region
      %s22 = ssub.s32 1024, 1024
      %23 = vsyncadd [#allocation3], %s22
      %s24 = sshll.u32 [#allocation2], 4
      %s25 = int_to_ptr.vmem [resolvable:$true] %s24
      %30 = dma.hbm_to_vmem [thread:$0]  %s1, 1024, %s25, [#allocation3], 256, 256, 16
    $region9: #{tpu_custom_call.1} parent=1 // pred_fallthru
      _
    // Predicated region
    $region10: #{tpu_custom_call.1} parent=1 // pred_check
      _
    $region11: #{tpu_custom_call.1} parent=1 // pred_check_branch
      %32 = sbr.rel (0) target = $region13
    $region12: #{tpu_custom_call.1} parent=1 // pred_region
      _
    $region13: #{tpu_custom_call.1} parent=1 // pred_fallthru
      _
    // Predicated region
    $region14: #{tpu_custom_call.1} parent=1 // pred_check
      _
    $region15: #{tpu_custom_call.1} parent=1 // pred_check_branch
      %34 = sbr.rel (0) target = $region17
    $region16: #{tpu_custom_call.1} parent=1 // pred_region
      _
    $region17: #{tpu_custom_call.1} parent=1 // pred_fallthru
      _
    // Predicated region
    $region18: #{tpu_custom_call.1} parent=1 // pred_check
      _
    $region19: #{tpu_custom_call.1} parent=1 // pred_check_branch
      %36 = sbr.rel (0) target = $region21
    $region20: #{tpu_custom_call.1} parent=1 // pred_region
      _
    $region21: #{tpu_custom_call.1} parent=1 // pred_fallthru
      _
    // Predicated region
    $region22: #{tpu_custom_call.1} parent=1 // pred_check
      _
    $region23: #{tpu_custom_call.1} parent=1 // pred_check_branch
      %38 = sbr.rel (0) target = $region25
    $region24: #{tpu_custom_call.1} parent=1 // pred_region
      %s40 = ssub.s32 4096, 4096
      %41 = vsyncadd [#allocation6], %s40
      %s42 = sshll.u32 [#allocation5], 4
      %s43 = int_to_ptr.vmem [resolvable:$true] %s42
      %48 = dma.hbm_to_vmem [thread:$0]  %s5, 4096, %s43, [#allocation6], 256, 256, 16
    $region25: #{tpu_custom_call.1} parent=1 // pred_fallthru
      _
    // Predicated region
    $region26: #{tpu_custom_call.1} parent=1 // pred_check
      _
    $region27: #{tpu_custom_call.1} parent=1 // pred_check_branch
      %50 = sbr.rel (0) target = $region29
    $region28: #{tpu_custom_call.1} parent=1 // pred_region
      _
    $region29: #{tpu_custom_call.1} parent=1 // pred_fallthru
      _
    // Predicated region
    $region30: #{tpu_custom_call.1} parent=1 // pred_check
      _
    $region31: #{tpu_custom_call.1} parent=1 // pred_check_branch
      %52 = sbr.rel (0) target = $region33
    $region32: #{tpu_custom_call.1} parent=1 // pred_region
      _
    $region33: #{tpu_custom_call.1} parent=1 // pred_fallthru
      _
    // Predicated region
    $region34: #{tpu_custom_call.1} parent=1 // pred_check
      _
    $region35: #{tpu_custom_call.1} parent=1 // pred_check_branch
      %54 = sbr.rel (0) target = $region37
    $region36: #{tpu_custom_call.1} parent=1 // pred_region
      _
    $region37: #{tpu_custom_call.1} parent=1 // pred_fallthru
      _
    // Predicated region
    $region38: #{tpu_custom_call.1} parent=1 // pred_check
      _
    $region39: #{tpu_custom_call.1} parent=1 // pred_check_branch
      %56 = sbr.rel (0) target = $region41
    $region40: #{tpu_custom_call.1} parent=1 // pred_region
      %57 = dma.done [#allocation3], 1024
    $region41: #{tpu_custom_call.1} parent=1 // pred_fallthru
      _
    // Predicated region
    $region42: #{tpu_custom_call.1} parent=1 // pred_check
      _
    $region43: #{tpu_custom_call.1} parent=1 // pred_check_branch
      %59 = sbr.rel (0) target = $region45
    $region44: #{tpu_custom_call.1} parent=1 // pred_region
      %60 = dma.done [#allocation6], 4096
    $region45: #{tpu_custom_call.1} parent=1 // pred_fallthru
      _
    %v61 = vld [vmem:[#allocation2] sm:$0xff]
    %v62 = vld [vmem:[#allocation2 + $0x8] sm:$0xff]
    %v63 = vld [vmem:[#allocation2 + $0x10] sm:$0xff]
    %v64 = vld [vmem:[#allocation2 + $0x18] sm:$0xff]
    %v65 = vld [vmem:[#allocation2 + $0x20] sm:$0xff]
    %v66 = vld [vmem:[#allocation2 + $0x28] sm:$0xff]
    %v67 = vld [vmem:[#allocation2 + $0x30] sm:$0xff]
    %v68 = vld [vmem:[#allocation2 + $0x38] sm:$0xff]
    %v69 = vld [vmem:[%s2] sm:$0x3]
    %v70 = vld [vmem:[%s3] sm:$0xff]
    %v71 = vld [vmem:[%s3 + $0x8] sm:$0xff]
    %v72 = vld [vmem:[%s3 + $0x10] sm:$0xff]
    %v73 = vld [vmem:[%s3 + $0x18] sm:$0xff]
    %v74 = vld [vmem:[%s3 + $0x20] sm:$0xff]
    %v75 = vld [vmem:[%s3 + $0x28] sm:$0xff]
    %v76 = vld [vmem:[%s3 + $0x30] sm:$0xff]
    %v77 = vld [vmem:[%s3 + $0x38] sm:$0xff]
    %v78 = vld [vmem:[%s3 + $0x40] sm:$0xff]
    %v79 = vld [vmem:[%s3 + $0x48] sm:$0xff]
    %v80 = vld [vmem:[%s3 + $0x50] sm:$0xff]
    %v81 = vld [vmem:[%s3 + $0x58] sm:$0xff]
    %v82 = vld [vmem:[%s3 + $0x60] sm:$0xff]
    %v83 = vld [vmem:[%s3 + $0x68] sm:$0xff]
    %v84 = vld [vmem:[%s3 + $0x70] sm:$0xff]
    %v85 = vld [vmem:[%s3 + $0x78] sm:$0xff]
    %v86 = vld [vmem:[%s3 + $0x80] sm:$0xff]
    %v87 = vld [vmem:[%s3 + $0x88] sm:$0xff]
    %v88 = vld [vmem:[%s3 + $0x90] sm:$0xff]
    %v89 = vld [vmem:[%s3 + $0x98] sm:$0xff]
    %v90 = vld [vmem:[%s3 + $0xa0] sm:$0xff]
    %v91 = vld [vmem:[%s3 + $0xa8] sm:$0xff]
    %v92 = vld [vmem:[%s3 + $0xb0] sm:$0xff]
    %v93 = vld [vmem:[%s3 + $0xb8] sm:$0xff]
    %v94 = vld [vmem:[%s3 + $0xc0] sm:$0xff]
    %v95 = vld [vmem:[%s3 + $0xc8] sm:$0xff]
    %v96 = vld [vmem:[%s3 + $0xd0] sm:$0xff]
    %v97 = vld [vmem:[%s3 + $0xd8] sm:$0xff]
    %v98 = vld [vmem:[%s3 + $0xe0] sm:$0xff]
    %v99 = vld [vmem:[%s3 + $0xe8] sm:$0xff]
    %v100 = vld [vmem:[%s3 + $0xf0] sm:$0xff]
    %v101 = vld [vmem:[%s3 + $0xf8] sm:$0xff]
    %v102 = vld [vmem:[%s4] sm:$0x1]
    %v103 = vld [vmem:[#allocation5] sm:$0xff]
    %v104 = vld [vmem:[#allocation5 + $0x8] sm:$0xff]
    %v105 = vld [vmem:[#allocation5 + $0x10] sm:$0xff]
    %v106 = vld [vmem:[#allocation5 + $0x18] sm:$0xff]
    %v107 = vld [vmem:[#allocation5 + $0x20] sm:$0xff]
    %v108 = vld [vmem:[#allocation5 + $0x28] sm:$0xff]
    %v109 = vld [vmem:[#allocation5 + $0x30] sm:$0xff]
    %v110 = vld [vmem:[#allocation5 + $0x38] sm:$0xff]
    %v111 = vld [vmem:[#allocation5 + $0x40] sm:$0xff]
    %v112 = vld [vmem:[#allocation5 + $0x48] sm:$0xff]
    %v113 = vld [vmem:[#allocation5 + $0x50] sm:$0xff]
    %v114 = vld [vmem:[#allocation5 + $0x58] sm:$0xff]
    %v115 = vld [vmem:[#allocation5 + $0x60] sm:$0xff]
    %v116 = vld [vmem:[#allocation5 + $0x68] sm:$0xff]
    %v117 = vld [vmem:[#allocation5 + $0x70] sm:$0xff]
    %v118 = vld [vmem:[#allocation5 + $0x78] sm:$0xff]
    %v119 = vld [vmem:[#allocation5 + $0x80] sm:$0xff]
    %v120 = vld [vmem:[#allocation5 + $0x88] sm:$0xff]
    %v121 = vld [vmem:[#allocation5 + $0x90] sm:$0xff]
    %v122 = vld [vmem:[#allocation5 + $0x98] sm:$0xff]
    %v123 = vld [vmem:[#allocation5 + $0xa0] sm:$0xff]
    %v124 = vld [vmem:[#allocation5 + $0xa8] sm:$0xff]
    %v125 = vld [vmem:[#allocation5 + $0xb0] sm:$0xff]
    %v126 = vld [vmem:[#allocation5 + $0xb8] sm:$0xff]
    %v127 = vld [vmem:[#allocation5 + $0xc0] sm:$0xff]
    %v128 = vld [vmem:[#allocation5 + $0xc8] sm:$0xff]
    %v129 = vld [vmem:[#allocation5 + $0xd0] sm:$0xff]
    %v130 = vld [vmem:[#allocation5 + $0xd8] sm:$0xff]
    %v131 = vld [vmem:[#allocation5 + $0xe0] sm:$0xff]
    %v132 = vld [vmem:[#allocation5 + $0xe8] sm:$0xff]
    %v133 = vld [vmem:[#allocation5 + $0xf0] sm:$0xff]
    %v134 = vld [vmem:[#allocation5 + $0xf8] sm:$0xff]
    %v135 = vld [vmem:[%s6] sm:$0x3]
    %v136 = vld [vmem:[%s7] sm:$0xff]
    %v137 = vld [vmem:[%s7 + $0x8] sm:$0xff]
    %v138 = vld [vmem:[%s7 + $0x10] sm:$0xff]
    %v139 = vld [vmem:[%s7 + $0x18] sm:$0xff]
    %v140 = vld [vmem:[%s7 + $0x20] sm:$0xff]
    %v141 = vld [vmem:[%s7 + $0x28] sm:$0xff]
    %v142 = vld [vmem:[%s7 + $0x30] sm:$0xff]
    %v143 = vld [vmem:[%s7 + $0x38] sm:$0xff]
    %v144 = vld [vmem:[%s7 + $0x40] sm:$0xff]
    %v145 = vld [vmem:[%s7 + $0x48] sm:$0xff]
    %v146 = vld [vmem:[%s7 + $0x50] sm:$0xff]
    %v147 = vld [vmem:[%s7 + $0x58] sm:$0xff]
    %v148 = vld [vmem:[%s7 + $0x60] sm:$0xff]
    %v149 = vld [vmem:[%s7 + $0x68] sm:$0xff]
    %v150 = vld [vmem:[%s7 + $0x70] sm:$0xff]
    %v151 = vld [vmem:[%s7 + $0x78] sm:$0xff]
    %v152 = vld [vmem:[%s7 + $0x80] sm:$0xff]
    %v153 = vld [vmem:[%s7 + $0x88] sm:$0xff]
    %v154 = vld [vmem:[%s7 + $0x90] sm:$0xff]
    %v155 = vld [vmem:[%s7 + $0x98] sm:$0xff]
    %v156 = vld [vmem:[%s7 + $0xa0] sm:$0xff]
    %v157 = vld [vmem:[%s7 + $0xa8] sm:$0xff]
    %v158 = vld [vmem:[%s7 + $0xb0] sm:$0xff]
    %v159 = vld [vmem:[%s7 + $0xb8] sm:$0xff]
    %v160 = vld [vmem:[%s7 + $0xc0] sm:$0xff]
    %v161 = vld [vmem:[%s7 + $0xc8] sm:$0xff]
    %v162 = vld [vmem:[%s7 + $0xd0] sm:$0xff]
    %v163 = vld [vmem:[%s7 + $0xd8] sm:$0xff]
    %v164 = vld [vmem:[%s7 + $0xe0] sm:$0xff]
    %v165 = vld [vmem:[%s7 + $0xe8] sm:$0xff]
    %v166 = vld [vmem:[%s7 + $0xf0] sm:$0xff]
    %v167 = vld [vmem:[%s7 + $0xf8] sm:$0xff]
    %v168 = vld [vmem:[%s8] sm:$0x1]
    %v169 = vld [vmem:[%s0] sm:$0xff]
    %v171 = vlaneseq
    %v172 = vshrl.u32 %v171, 7
    %v173 = vsub.s32 0, %v172
    %v174 = vrot.slane %v69, %v173
    %v175 = vlaneseq
    %v176 = vshrl.u32 %v175, 7
    %v177 = vsub.s32 1, %v176
    %v178 = vrot.slane %v69, %v177
    %vm181 = vcmask 261120
    %v183 = vsel %vm181, %v169, 0
    %185 = vmatprep.subr.mxu0 %v62
    %186 = vmatpush1.msra.mxu0 %v61
    %187 = vmatprep.subr.mxu0 %v64
    %188 = vmatpush1.msra.mxu0 %v63
    %189 = vmatprep.subr.mxu0 %v66
    %190 = vmatpush1.msra.mxu0 %v65
    %191 = vmatprep.subr.mxu0 %v68
    %192 = vmatpush1.msra.mxu0 %v67
    %193 = vmatprep.subr.mxu0 0.0
    %194 = vmatpush1.msra.mxu0 0.0
    %195 = vmatprep.subr.mxu0 0.0
    %196 = vmatpush1.msra.mxu0 0.0
    %197 = vmatprep.subr.mxu0 0.0
    %198 = vmatpush1.msra.mxu0 0.0
    %199 = vmatprep.subr.mxu0 0.0
    %200 = vmatpush1.msra.mxu0 0.0
    %201 = vmatprep.subr.mxu0 0.0
    %202 = vmatpush1.msra.mxu0 0.0
    %203 = vmatprep.subr.mxu0 0.0
    %204 = vmatpush1.msra.mxu0 0.0
    %205 = vmatprep.subr.mxu0 0.0
    %206 = vmatpush1.msra.mxu0 0.0
    %207 = vmatprep.subr.mxu0 0.0
    %208 = vmatpush1.msra.mxu0 0.0
    %209 = vmatprep.subr.mxu0 0.0
    %210 = vmatpush1.msra.mxu0 0.0
    %211 = vmatprep.subr.mxu0 0.0
    %212 = vmatpush1.msra.mxu0 0.0
    %213 = vmatprep.subr.mxu0 0.0
    %214 = vmatpush1.msra.mxu0 0.0
    %215 = vmatprep.subr.mxu0 0.0
    %216 = vmatpush1.msra.mxu0 0.0
    %217 = vmatprep.subr.mxu0 0.0
    %218 = vmatpush1.msra.mxu0 0.0
    %219 = vmatprep.subr.mxu0 0.0
    %220 = vmatpush1.msra.mxu0 0.0
    %221 = vmatprep.subr.mxu0 0.0
    %222 = vmatpush1.msra.mxu0 0.0
    %223 = vmatprep.subr.mxu0 0.0
    %224 = vmatpush1.msra.mxu0 0.0
    %225 = vmatprep.subr.mxu0 0.0
    %226 = vmatpush1.msra.mxu0 0.0
    %227 = vmatprep.subr.mxu0 0.0
    %228 = vmatpush1.msra.mxu0 0.0
    %229 = vmatprep.subr.mxu0 0.0
    %230 = vmatpush1.msra.mxu0 0.0
    %231 = vmatprep.subr.mxu0 0.0
    %232 = vmatpush1.msra.mxu0 0.0
    %233 = vmatprep.subr.mxu0 0.0
    %234 = vmatpush1.msra.mxu0 0.0
    %235 = vmatprep.subr.mxu0 0.0
    %236 = vmatpush1.msra.mxu0 0.0
    %237 = vmatprep.subr.mxu0 0.0
    %238 = vmatpush1.msra.mxu0 0.0
    %239 = vmatprep.subr.mxu0 0.0
    %240 = vmatpush1.msra.mxu0 0.0
    %241 = vmatprep.subr.mxu0 0.0
    %242 = vmatpush1.msra.mxu0 0.0
    %243 = vmatprep.subr.mxu0 0.0
    %244 = vmatpush1.msra.mxu0 0.0
    %245 = vmatprep.subr.mxu0 0.0
    %246 = vmatpush1.msra.mxu0 0.0
    %247 = vmatprep.subr.mxu0 0.0
    %248 = vmatpush1.msra.mxu0 0.0
    %249 = vmatprep.mubr.f32.mxu0 0.0
    %250 = vmatmul.mubr.f32.gmra.mrb[0].mxu0 %v183
    %v251 = vpop.f32.mrb[0].mxu0
    %v252 = vadd.f32 %v174, %v251
    %v253 = vpop.f32.mrb[0].mxu0
    %v254 = vadd.f32 %v178, %v253
    %255 = vdwg.mxu0
    %v256 = vmax.f32 %v252, 0.0
    %v257 = vmax.f32 %v254, 0.0
    %v259 = vlaneseq
    %v260 = vshrl.u32 %v259, 7
    %v261 = vsub.s32 0, %v260
    %v262 = vrot.slane %v102, %v261
    %264 = vmatprep.subr.mxu0 0.0
    %265 = vmatpush1.msra.mxu0 %v70
    %266 = vmatprep.subr.mxu0 0.0
    %267 = vmatpush1.msra.mxu0 %v71
    %268 = vmatprep.subr.mxu0 0.0
    %269 = vmatpush1.msra.mxu0 %v72
    %270 = vmatprep.subr.mxu0 0.0
    %271 = vmatpush1.msra.mxu0 %v73
    %272 = vmatprep.subr.mxu0 0.0
    %273 = vmatpush1.msra.mxu0 %v74
    %274 = vmatprep.subr.mxu0 0.0
    %275 = vmatpush1.msra.mxu0 %v75
    %276 = vmatprep.subr.mxu0 0.0
    %277 = vmatpush1.msra.mxu0 %v76
    %278 = vmatprep.subr.mxu0 0.0
    %279 = vmatpush1.msra.mxu0 %v77
    %280 = vmatprep.subr.mxu0 0.0
    %281 = vmatpush1.msra.mxu0 %v78
    %282 = vmatprep.subr.mxu0 0.0
    %283 = vmatpush1.msra.mxu0 %v79
    %284 = vmatprep.subr.mxu0 0.0
    %285 = vmatpush1.msra.mxu0 %v80
    %286 = vmatprep.subr.mxu0 0.0
    %287 = vmatpush1.msra.mxu0 %v81
    %288 = vmatprep.subr.mxu0 0.0
    %289 = vmatpush1.msra.mxu0 %v82
    %290 = vmatprep.subr.mxu0 0.0
    %291 = vmatpush1.msra.mxu0 %v83
    %292 = vmatprep.subr.mxu0 0.0
    %293 = vmatpush1.msra.mxu0 %v84
    %294 = vmatprep.subr.mxu0 0.0
    %295 = vmatpush1.msra.mxu0 %v85
    %296 = vmatprep.subr.mxu0 0.0
    %297 = vmatpush1.msra.mxu0 %v86
    %298 = vmatprep.subr.mxu0 0.0
    %299 = vmatpush1.msra.mxu0 %v87
    %300 = vmatprep.subr.mxu0 0.0
    %301 = vmatpush1.msra.mxu0 %v88
    %302 = vmatprep.subr.mxu0 0.0
    %303 = vmatpush1.msra.mxu0 %v89
    %304 = vmatprep.subr.mxu0 0.0
    %305 = vmatpush1.msra.mxu0 %v90
    %306 = vmatprep.subr.mxu0 0.0
    %307 = vmatpush1.msra.mxu0 %v91
    %308 = vmatprep.subr.mxu0 0.0
    %309 = vmatpush1.msra.mxu0 %v92
    %310 = vmatprep.subr.mxu0 0.0
    %311 = vmatpush1.msra.mxu0 %v93
    %312 = vmatprep.subr.mxu0 0.0
    %313 = vmatpush1.msra.mxu0 %v94
    %314 = vmatprep.subr.mxu0 0.0
    %315 = vmatpush1.msra.mxu0 %v95
    %316 = vmatprep.subr.mxu0 0.0
    %317 = vmatpush1.msra.mxu0 %v96
    %318 = vmatprep.subr.mxu0 0.0
    %319 = vmatpush1.msra.mxu0 %v97
    %320 = vmatprep.subr.mxu0 0.0
    %321 = vmatpush1.msra.mxu0 %v98
    %322 = vmatprep.subr.mxu0 0.0
    %323 = vmatpush1.msra.mxu0 %v99
    %324 = vmatprep.subr.mxu0 0.0
    %325 = vmatpush1.msra.mxu0 %v100
    %326 = vmatprep.subr.mxu0 0.0
    %327 = vmatpush1.msra.mxu0 %v101
    %328 = vmatprep.mubr.f32.mxu0 %v257
    %329 = vmatmul.mubr.f32.gmra.mrb[0].mxu0 %v256
    %v330 = vpop.f32.mrb[0].mxu0
    %v331 = vadd.f32 %v262, %v330
    %v332 = vpop.f32.mrb[0].mxu0
    %333 = vdwg.mxu0
    %v334 = vmax.f32 %v331, 0.0
    %v336 = vlaneseq
    %v337 = vshrl.u32 %v336, 7
    %v338 = vsub.s32 0, %v337
    %v339 = vrot.slane %v135, %v338
    %v340 = vlaneseq
    %v341 = vshrl.u32 %v340, 7
    %v342 = vsub.s32 1, %v341
    %v343 = vrot.slane %v135, %v342
    %346 = vmatprep.subr.mxu0 %v104
    %347 = vmatpush1.msra.mxu0 %v103
    %348 = vmatprep.subr.mxu0 %v106
    %349 = vmatpush1.msra.mxu0 %v105
    %350 = vmatprep.subr.mxu0 %v108
    %351 = vmatpush1.msra.mxu0 %v107
    %352 = vmatprep.subr.mxu0 %v110
    %353 = vmatpush1.msra.mxu0 %v109
    %354 = vmatprep.subr.mxu0 %v112
    %355 = vmatpush1.msra.mxu0 %v111
    %356 = vmatprep.subr.mxu0 %v114
    %357 = vmatpush1.msra.mxu0 %v113
    %358 = vmatprep.subr.mxu0 %v116
    %359 = vmatpush1.msra.mxu0 %v115
    %360 = vmatprep.subr.mxu0 %v118
    %361 = vmatpush1.msra.mxu0 %v117
    %362 = vmatprep.subr.mxu0 %v120
    %363 = vmatpush1.msra.mxu0 %v119
    %364 = vmatprep.subr.mxu0 %v122
    %365 = vmatpush1.msra.mxu0 %v121
    %366 = vmatprep.subr.mxu0 %v124
    %367 = vmatpush1.msra.mxu0 %v123
    %368 = vmatprep.subr.mxu0 %v126
    %369 = vmatpush1.msra.mxu0 %v125
    %370 = vmatprep.subr.mxu0 %v128
    %371 = vmatpush1.msra.mxu0 %v127
    %372 = vmatprep.subr.mxu0 %v130
    %373 = vmatpush1.msra.mxu0 %v129
    %374 = vmatprep.subr.mxu0 %v132
    %375 = vmatpush1.msra.mxu0 %v131
    %376 = vmatprep.subr.mxu0 %v134
    %377 = vmatpush1.msra.mxu0 %v133
    %378 = vmatprep.subr.mxu0 0.0
    %379 = vmatpush1.msra.mxu0 0.0
    %380 = vmatprep.subr.mxu0 0.0
    %381 = vmatpush1.msra.mxu0 0.0
    %382 = vmatprep.subr.mxu0 0.0
    %383 = vmatpush1.msra.mxu0 0.0
    %384 = vmatprep.subr.mxu0 0.0
    %385 = vmatpush1.msra.mxu0 0.0
    %386 = vmatprep.subr.mxu0 0.0
    %387 = vmatpush1.msra.mxu0 0.0
    %388 = vmatprep.subr.mxu0 0.0
    %389 = vmatpush1.msra.mxu0 0.0
    %390 = vmatprep.subr.mxu0 0.0
    %391 = vmatpush1.msra.mxu0 0.0
    %392 = vmatprep.subr.mxu0 0.0
    %393 = vmatpush1.msra.mxu0 0.0
    %394 = vmatprep.subr.mxu0 0.0
    %395 = vmatpush1.msra.mxu0 0.0
    %396 = vmatprep.subr.mxu0 0.0
    %397 = vmatpush1.msra.mxu0 0.0
    %398 = vmatprep.subr.mxu0 0.0
    %399 = vmatpush1.msra.mxu0 0.0
    %400 = vmatprep.subr.mxu0 0.0
    %401 = vmatpush1.msra.mxu0 0.0
    %402 = vmatprep.subr.mxu0 0.0
    %403 = vmatpush1.msra.mxu0 0.0
    %404 = vmatprep.subr.mxu0 0.0
    %405 = vmatpush1.msra.mxu0 0.0
    %406 = vmatprep.subr.mxu0 0.0
    %407 = vmatpush1.msra.mxu0 0.0
    %408 = vmatprep.subr.mxu0 0.0
    %409 = vmatpush1.msra.mxu0 0.0
    %410 = vmatprep.mubr.f32.mxu0 0.0
    %411 = vmatmul.mubr.f32.gmra.mrb[0].mxu0 %v334
    %v412 = vpop.f32.mrb[0].mxu0
    %v413 = vadd.f32 %v339, %v412
    %v414 = vpop.f32.mrb[0].mxu0
    %v415 = vadd.f32 %v343, %v414
    %416 = vdwg.mxu0
    %v417 = vmax.f32 %v413, 0.0
    %v418 = vmax.f32 %v415, 0.0
    %v420 = vlaneseq
    %v421 = vshrl.u32 %v420, 7
    %v422 = vsub.s32 0, %v421
    %v423 = vrot.slane %v168, %v422
    %425 = vmatprep.subr.mxu0 0.0
    %426 = vmatpush1.msra.mxu0 %v136
    %427 = vmatprep.subr.mxu0 0.0
    %428 = vmatpush1.msra.mxu0 %v137
    %429 = vmatprep.subr.mxu0 0.0
    %430 = vmatpush1.msra.mxu0 %v138
    %431 = vmatprep.subr.mxu0 0.0
    %432 = vmatpush1.msra.mxu0 %v139
    %433 = vmatprep.subr.mxu0 0.0
    %434 = vmatpush1.msra.mxu0 %v140
    %435 = vmatprep.subr.mxu0 0.0
    %436 = vmatpush1.msra.mxu0 %v141
    %437 = vmatprep.subr.mxu0 0.0
    %438 = vmatpush1.msra.mxu0 %v142
    %439 = vmatprep.subr.mxu0 0.0
    %440 = vmatpush1.msra.mxu0 %v143
    %441 = vmatprep.subr.mxu0 0.0
    %442 = vmatpush1.msra.mxu0 %v144
    %443 = vmatprep.subr.mxu0 0.0
    %444 = vmatpush1.msra.mxu0 %v145
    %445 = vmatprep.subr.mxu0 0.0
    %446 = vmatpush1.msra.mxu0 %v146
    %447 = vmatprep.subr.mxu0 0.0
    %448 = vmatpush1.msra.mxu0 %v147
    %449 = vmatprep.subr.mxu0 0.0
    %450 = vmatpush1.msra.mxu0 %v148
    %451 = vmatprep.subr.mxu0 0.0
    %452 = vmatpush1.msra.mxu0 %v149
    %453 = vmatprep.subr.mxu0 0.0
    %454 = vmatpush1.msra.mxu0 %v150
    %455 = vmatprep.subr.mxu0 0.0
    %456 = vmatpush1.msra.mxu0 %v151
    %457 = vmatprep.subr.mxu0 0.0
    %458 = vmatpush1.msra.mxu0 %v152
    %459 = vmatprep.subr.mxu0 0.0
    %460 = vmatpush1.msra.mxu0 %v153
    %461 = vmatprep.subr.mxu0 0.0
    %462 = vmatpush1.msra.mxu0 %v154
    %463 = vmatprep.subr.mxu0 0.0
    %464 = vmatpush1.msra.mxu0 %v155
    %465 = vmatprep.subr.mxu0 0.0
    %466 = vmatpush1.msra.mxu0 %v156
    %467 = vmatprep.subr.mxu0 0.0
    %468 = vmatpush1.msra.mxu0 %v157
    %469 = vmatprep.subr.mxu0 0.0
    %470 = vmatpush1.msra.mxu0 %v158
    %471 = vmatprep.subr.mxu0 0.0
    %472 = vmatpush1.msra.mxu0 %v159
    %473 = vmatprep.subr.mxu0 0.0
    %474 = vmatpush1.msra.mxu0 %v160
    %475 = vmatprep.subr.mxu0 0.0
    %476 = vmatpush1.msra.mxu0 %v161
    %477 = vmatprep.subr.mxu0 0.0
    %478 = vmatpush1.msra.mxu0 %v162
    %479 = vmatprep.subr.mxu0 0.0
    %480 = vmatpush1.msra.mxu0 %v163
    %481 = vmatprep.subr.mxu0 0.0
    %482 = vmatpush1.msra.mxu0 %v164
    %483 = vmatprep.subr.mxu0 0.0
    %484 = vmatpush1.msra.mxu0 %v165
    %485 = vmatprep.subr.mxu0 0.0
    %486 = vmatpush1.msra.mxu0 %v166
    %487 = vmatprep.subr.mxu0 0.0
    %488 = vmatpush1.msra.mxu0 %v167
    %489 = vmatprep.mubr.f32.mxu0 %v418
    %490 = vmatmul.mubr.f32.gmra.mrb[0].mxu0 %v417
    %v491 = vpop.f32.mrb[0].mxu0
    %v492 = vadd.f32 %v423, %v491
    %v493 = vpop.f32.mrb[0].mxu0
    %494 = vdwg.mxu0
    %vm495 = vcmask 64512
    %496 = vst.msk [vmem:[#allocation7] sm:$0xff] %vm495, %v492
    // Predicated region
    $region46: #{tpu_custom_call.1} parent=1 // pred_check
      _
    $region47: #{tpu_custom_call.1} parent=1 // pred_check_branch
      %498 = sbr.rel (0) target = $region49
    $region48: #{tpu_custom_call.1} parent=1 // pred_region
      %s500 = ssub.s32 128, 128
      %501 = vsyncadd [#allocation4], %s500
      %s503 = sshll.u32 [#allocation7], 4
      %s504 = int_to_ptr.vmem [resolvable:$true] %s503
      %506 = dma.vmem_to_hbm [thread:$0]  %s504, 128, %s9, [#allocation4]
    $region49: #{tpu_custom_call.1} parent=1 // pred_fallthru
      _
    // Predicated region
    $region50: #{tpu_custom_call.1} parent=1 // pred_check
      _
    $region51: #{tpu_custom_call.1} parent=1 // pred_check_branch
      %508 = sbr.rel (0) target = $region53
    $region52: #{tpu_custom_call.1} parent=1 // pred_region
      %509 = dma.done [#allocation4], 128
    $region53: #{tpu_custom_call.1} parent=1 // pred_fallthru
      _
    %510 = vsyncpa [#allocation3], 1
    %511 = vsyncpa [#allocation6], 1
    %512 = vsyncpa [#allocation4], 1

</llo_original>
